<compile_context>
chip_gen: v6e
topology: v6e:2x2x1
jax: 0.10.0
libtpu: 0.0.40
codegen_flags: <defaults>
</compile_context>

<pallas_src>
import functools

import jax
import jax.numpy as jnp
from jax.experimental import pallas as pl
from jax.experimental.pallas import tpu as pltpu

LANE = 128
SUBLANE = 8


def generator_kernel(x_ref,
                     w1_ref, b1_ref,
                     w2_ref, b2_ref,
                     w3_ref, b3_ref,
                     w4_ref, b4_ref,
                     o_ref):
    """Fused 4-layer MLP on one (tile, 128)-padded batch tile."""
    cd = w1_ref.dtype  # matmul operand dtype (f32 or bf16); accum is f32.

    x = x_ref[...].astype(cd)
    h = jnp.dot(x, w1_ref[...], preferred_element_type=jnp.float32) + b1_ref[...]
    h = jnp.maximum(h, 0.0)

    h = jnp.dot(h.astype(cd), w2_ref[...],
                preferred_element_type=jnp.float32) + b2_ref[...]
    h = jnp.maximum(h, 0.0)

    h = jnp.dot(h.astype(cd), w3_ref[...],
                preferred_element_type=jnp.float32) + b3_ref[...]
    h = jnp.maximum(h, 0.0)

    out = jnp.dot(h.astype(cd), w4_ref[...],
                  preferred_element_type=jnp.float32) + b4_ref[...]
    o_ref[...] = out.astype(o_ref.dtype)


def _pad2d(w, rows, cols):
    return jnp.pad(w, ((0, rows - w.shape[0]), (0, cols - w.shape[1])))


@functools.partial(jax.jit, static_argnames=("batch_tile", "compute_dtype"))
def generator_forward(x, params, *, batch_tile=256,
                      compute_dtype=jnp.bfloat16):
    """Run the fused Generator MLP with a Pallas kernel, tiling over batch."""
    (w1, b1), (w2, b2), (w3, b3), (w4, b4) = params
    B, in_dim = x.shape
    hidden = w1.shape[1]
    out_dim = w4.shape[1]

    # Lane-dense padded feature dims (multiples of 128).
    in_pad = pl.cdiv(in_dim, LANE) * LANE
    out_pad = pl.cdiv(out_dim, LANE) * LANE

    # Batch tile: one big tile when B is small, otherwise `batch_tile` rows.
    batch_tile = max(SUBLANE, (batch_tile // SUBLANE) * SUBLANE)
    if B <= batch_tile:
        tile = pl.cdiv(B, SUBLANE) * SUBLANE
    else:
        tile = batch_tile
    Bp = pl.cdiv(B, tile) * tile

    # Pad + cast parameters (zero padding keeps the math identical on the
    # original [:, :out_dim] slice).  Matmul operands in `compute_dtype`,
    # biases stay f32 so the bias-add/ReLU run on the f32 VPU path.
    w1p = _pad2d(w1, in_pad, hidden).astype(compute_dtype)
    w2p = w2.astype(compute_dtype)
    w3p = w3.astype(compute_dtype)
    w4p = _pad2d(w4, hidden, out_pad).astype(compute_dtype)
    b1r = b1.reshape(1, -1).astype(jnp.float32)
    b2r = b2.reshape(1, -1).astype(jnp.float32)
    b3r = b3.reshape(1, -1).astype(jnp.float32)
    b4r = jnp.pad(b4, (0, out_pad - out_dim)).reshape(1, -1).astype(jnp.float32)

    # Pad x (rows to Bp, feature cols to 128).
    xp = jnp.pad(x, ((0, Bp - B), (0, in_pad - in_dim)))

    grid = (Bp // tile,)

    # Weights/biases are tiny (~134 KiB): keep them resident in VMEM,
    # untiled, instead of routing them through the per-step pipeline.
    resident = pl.BlockSpec(memory_space=pltpu.MemorySpace.VMEM)

    out_padded = pl.pallas_call(
        generator_kernel,
        out_shape=jax.ShapeDtypeStruct((Bp, out_pad), x.dtype),
        grid_spec=pltpu.PrefetchScalarGridSpec(
            num_scalar_prefetch=0,
            grid=grid,
            in_specs=[
                pl.BlockSpec((tile, in_pad), lambda i: (i, 0)),
                resident, resident,   # w1, b1
                resident, resident,   # w2, b2
                resident, resident,   # w3, b3
                resident, resident,   # w4, b4
            ],
            out_specs=pl.BlockSpec((tile, out_pad), lambda i: (i, 0)),
        ),
        compiler_params=pltpu.CompilerParams(
            dimension_semantics=("parallel",)),
    )(xp, w1p, b1r, w2p, b2r, w3p, b3r, w4p, b4r)

    return out_padded[:B, :out_dim]


def init_generator_params(key, input_size=8, hidden_size=128, output_size=2,
                          dtype=jnp.float32):
    """Deterministic init mirroring nn.Linear shapes.

    PyTorch Linear weight is (out, in); we store the transpose (in, out)
    so the kernel computes x @ W + b.
    """
    dims = [(input_size, hidden_size),
            (hidden_size, hidden_size),
            (hidden_size, hidden_size),
            (hidden_size, output_size)]
    params = []
    for (fan_in, fan_out) in dims:
        key, kw, kb = jax.random.split(key, 3)
        bound = 1.0 / jnp.sqrt(fan_in)
        w = jax.random.uniform(kw, (fan_in, fan_out), dtype, -bound, bound)
        b = jax.random.uniform(kb, (fan_out,), dtype, -bound, bound)
        params.append((w, b))
    return params


def generator_reference(x, params):
    (w1, b1), (w2, b2), (w3, b3), (w4, b4) = params
    h = jnp.maximum(x @ w1 + b1, 0.0)
    h = jnp.maximum(h @ w2 + b2, 0.0)
    h = jnp.maximum(h @ w3 + b3, 0.0)
    return h @ w4 + b4


if __name__ == "__main__":
    key = jax.random.PRNGKey(0)
    k_x, k_p = jax.random.split(key)

    input_size, hidden_size, output_size = 8, 128, 2
    batch = 64

    x = jax.random.normal(k_x, (batch, input_size), dtype=jnp.float32)
    params = init_generator_params(k_p, input_size, hidden_size, output_size)

    ref = generator_reference(x, params)

    # Full f32 path: bit-for-bit semantics of the PyTorch module.
    out_f32 = jax.block_until_ready(
        generator_forward(x, params, compute_dtype=jnp.float32))
    assert out_f32.shape == (batch, output_size)
    assert jnp.allclose(out_f32, ref, atol=1e-4, rtol=1e-4), "f32 mismatch"

    # bf16 matmul operands (default fast path on v6e/v7x), f32 accumulation.
    out_bf16 = jax.block_until_ready(
        generator_forward(x, params, compute_dtype=jnp.bfloat16))
    assert out_bf16.shape == (batch, output_size)
    assert jnp.allclose(out_bf16, ref, atol=3e-2, rtol=3e-2), "bf16 mismatch"

    print("KERNEL_OK")
</pallas_src>

<mosaic_0001>
module attributes {stable_mosaic.version = 11 : i64} {
  func.func @generator_kernel(%arg0: i32, %arg1: memref<64x128xf32, #tpu.memory_space<vmem>>, %arg2: memref<128x128xf32, #tpu.memory_space<vmem>>, %arg3: memref<1x128xf32, #tpu.memory_space<vmem>>, %arg4: memref<128x128xf32, #tpu.memory_space<vmem>>, %arg5: memref<1x128xf32, #tpu.memory_space<vmem>>, %arg6: memref<128x128xf32, #tpu.memory_space<vmem>>, %arg7: memref<1x128xf32, #tpu.memory_space<vmem>>, %arg8: memref<128x128xf32, #tpu.memory_space<vmem>>, %arg9: memref<1x128xf32, #tpu.memory_space<vmem>>, %arg10: memref<64x128xf32, #tpu.memory_space<vmem>>) attributes {dimension_semantics = [#tpu.dimension_semantics<parallel>], iteration_bounds = array<i64: 1>, scalar_prefetch = 0 : i64, scratch_operands = 0 : i64, tpu.core_type = #tpu.core_type<tc>, window_params = [{transform_indices = @transform_0, window_bounds = array<i64: 64, 128>}, {pipeline_mode = #tpu.pipeline_mode<synchronous>, transform_indices = @transform_1, window_bounds = array<i64: 128, 128>}, {pipeline_mode = #tpu.pipeline_mode<synchronous>, transform_indices = @transform_2, window_bounds = array<i64: 1, 128>}, {pipeline_mode = #tpu.pipeline_mode<synchronous>, transform_indices = @transform_3, window_bounds = array<i64: 128, 128>}, {pipeline_mode = #tpu.pipeline_mode<synchronous>, transform_indices = @transform_4, window_bounds = array<i64: 1, 128>}, {pipeline_mode = #tpu.pipeline_mode<synchronous>, transform_indices = @transform_5, window_bounds = array<i64: 128, 128>}, {pipeline_mode = #tpu.pipeline_mode<synchronous>, transform_indices = @transform_6, window_bounds = array<i64: 1, 128>}, {pipeline_mode = #tpu.pipeline_mode<synchronous>, transform_indices = @transform_7, window_bounds = array<i64: 128, 128>}, {pipeline_mode = #tpu.pipeline_mode<synchronous>, transform_indices = @transform_8, window_bounds = array<i64: 1, 128>}, {transform_indices = @transform_9, window_bounds = array<i64: 64, 128>}]} {
    %c0 = arith.constant 0 : index
    %c0_0 = arith.constant 0 : index
    %0 = vector.load %arg1[%c0, %c0_0] : memref<64x128xf32, #tpu.memory_space<vmem>>, vector<64x128xf32>
    %c0_1 = arith.constant 0 : index
    %c0_2 = arith.constant 0 : index
    %1 = vector.load %arg2[%c0_1, %c0_2] : memref<128x128xf32, #tpu.memory_space<vmem>>, vector<128x128xf32>
    %cst = arith.constant dense<0.000000e+00> : vector<64x128xf32>
    %2 = tpu.matmul %0, %1, %cst {dimension_numbers = #tpu.dot_dimension_numbers<[1], [0], [0], [1], [0, 0, 1, 1], [], []>} : vector<64x128xf32>, vector<128x128xf32>, vector<64x128xf32> -> vector<64x128xf32>
    %c0_3 = arith.constant 0 : index
    %c0_4 = arith.constant 0 : index
    %3 = vector.load %arg3[%c0_3, %c0_4] : memref<1x128xf32, #tpu.memory_space<vmem>>, vector<1x128xf32>
    %4 = vector.broadcast %3 : vector<1x128xf32> to vector<64x128xf32>
    %5 = arith.addf %2, %4 : vector<64x128xf32>
    %cst_5 = arith.constant 0.000000e+00 : f32
    %6 = vector.broadcast %cst_5 : f32 to vector<64x128xf32>
    %7 = arith.maximumf %5, %6 : vector<64x128xf32>
    %c0_6 = arith.constant 0 : index
    %c0_7 = arith.constant 0 : index
    %8 = vector.load %arg4[%c0_6, %c0_7] : memref<128x128xf32, #tpu.memory_space<vmem>>, vector<128x128xf32>
    %cst_8 = arith.constant dense<0.000000e+00> : vector<64x128xf32>
    %9 = tpu.matmul %7, %8, %cst_8 {dimension_numbers = #tpu.dot_dimension_numbers<[1], [0], [0], [1], [0, 0, 1, 1], [], []>} : vector<64x128xf32>, vector<128x128xf32>, vector<64x128xf32> -> vector<64x128xf32>
    %c0_9 = arith.constant 0 : index
    %c0_10 = arith.constant 0 : index
    %10 = vector.load %arg5[%c0_9, %c0_10] : memref<1x128xf32, #tpu.memory_space<vmem>>, vector<1x128xf32>
    %11 = vector.broadcast %10 : vector<1x128xf32> to vector<64x128xf32>
    %12 = arith.addf %9, %11 : vector<64x128xf32>
    %cst_11 = arith.constant 0.000000e+00 : f32
    %13 = vector.broadcast %cst_11 : f32 to vector<64x128xf32>
    %14 = arith.maximumf %12, %13 : vector<64x128xf32>
    %c0_12 = arith.constant 0 : index
    %c0_13 = arith.constant 0 : index
    %15 = vector.load %arg6[%c0_12, %c0_13] : memref<128x128xf32, #tpu.memory_space<vmem>>, vector<128x128xf32>
    %cst_14 = arith.constant dense<0.000000e+00> : vector<64x128xf32>
    %16 = tpu.matmul %14, %15, %cst_14 {dimension_numbers = #tpu.dot_dimension_numbers<[1], [0], [0], [1], [0, 0, 1, 1], [], []>} : vector<64x128xf32>, vector<128x128xf32>, vector<64x128xf32> -> vector<64x128xf32>
    %c0_15 = arith.constant 0 : index
    %c0_16 = arith.constant 0 : index
    %17 = vector.load %arg7[%c0_15, %c0_16] : memref<1x128xf32, #tpu.memory_space<vmem>>, vector<1x128xf32>
    %18 = vector.broadcast %17 : vector<1x128xf32> to vector<64x128xf32>
    %19 = arith.addf %16, %18 : vector<64x128xf32>
    %cst_17 = arith.constant 0.000000e+00 : f32
    %20 = vector.broadcast %cst_17 : f32 to vector<64x128xf32>
    %21 = arith.maximumf %19, %20 : vector<64x128xf32>
    %c0_18 = arith.constant 0 : index
    %c0_19 = arith.constant 0 : index
    %22 = vector.load %arg8[%c0_18, %c0_19] : memref<128x128xf32, #tpu.memory_space<vmem>>, vector<128x128xf32>
    %cst_20 = arith.constant dense<0.000000e+00> : vector<64x128xf32>
    %23 = tpu.matmul %21, %22, %cst_20 {dimension_numbers = #tpu.dot_dimension_numbers<[1], [0], [0], [1], [0, 0, 1, 1], [], []>} : vector<64x128xf32>, vector<128x128xf32>, vector<64x128xf32> -> vector<64x128xf32>
    %c0_21 = arith.constant 0 : index
    %c0_22 = arith.constant 0 : index
    %24 = vector.load %arg9[%c0_21, %c0_22] : memref<1x128xf32, #tpu.memory_space<vmem>>, vector<1x128xf32>
    %25 = vector.broadcast %24 : vector<1x128xf32> to vector<64x128xf32>
    %26 = arith.addf %23, %25 : vector<64x128xf32>
    %c0_23 = arith.constant 0 : index
    %c0_24 = arith.constant 0 : index
    %27 = vector.load %arg10[%c0_23, %c0_24] : memref<64x128xf32, #tpu.memory_space<vmem>>, vector<64x128xf32>
    tpu.vector_store %arg10[%c0_23, %c0_24], %26 {strides = array<i32>} : memref<64x128xf32, #tpu.memory_space<vmem>>, vector<64x128xf32>,
    return
  }
  func.func @transform_0(%arg0: i32) -> (i32, i32) {
    %c0_i32 = arith.constant 0 : i32
    %c0_i32_0 = arith.constant 0 : i32
    return %arg0, %c0_i32 : i32, i32
  }
  func.func @transform_1(%arg0: i32) -> (i32, i32) {
    %c0_i32 = arith.constant 0 : i32
    %c0_i32_0 = arith.constant 0 : i32
    %c0_i32_1 = arith.constant 0 : i32
    return %c0_i32, %c0_i32_0 : i32, i32
  }
  func.func @transform_2(%arg0: i32) -> (i32, i32) {
    %c0_i32 = arith.constant 0 : i32
    %c0_i32_0 = arith.constant 0 : i32
    %c0_i32_1 = arith.constant 0 : i32
    return %c0_i32, %c0_i32_0 : i32, i32
  }
  func.func @transform_3(%arg0: i32) -> (i32, i32) {
    %c0_i32 = arith.constant 0 : i32
    %c0_i32_0 = arith.constant 0 : i32
    %c0_i32_1 = arith.constant 0 : i32
    return %c0_i32, %c0_i32_0 : i32, i32
  }
  func.func @transform_4(%arg0: i32) -> (i32, i32) {
    %c0_i32 = arith.constant 0 : i32
    %c0_i32_0 = arith.constant 0 : i32
    %c0_i32_1 = arith.constant 0 : i32
    return %c0_i32, %c0_i32_0 : i32, i32
  }
  func.func @transform_5(%arg0: i32) -> (i32, i32) {
    %c0_i32 = arith.constant 0 : i32
    %c0_i32_0 = arith.constant 0 : i32
    %c0_i32_1 = arith.constant 0 : i32
    return %c0_i32, %c0_i32_0 : i32, i32
  }
  func.func @transform_6(%arg0: i32) -> (i32, i32) {
    %c0_i32 = arith.constant 0 : i32
    %c0_i32_0 = arith.constant 0 : i32
    %c0_i32_1 = arith.constant 0 : i32
    return %c0_i32, %c0_i32_0 : i32, i32
  }
  func.func @transform_7(%arg0: i32) -> (i32, i32) {
    %c0_i32 = arith.constant 0 : i32
    %c0_i32_0 = arith.constant 0 : i32
    %c0_i32_1 = arith.constant 0 : i32
    return %c0_i32, %c0_i32_0 : i32, i32
  }
  func.func @transform_8(%arg0: i32) -> (i32, i32) {
    %c0_i32 = arith.constant 0 : i32
    %c0_i32_0 = arith.constant 0 : i32
    %c0_i32_1 = arith.constant 0 : i32
    return %c0_i32, %c0_i32_0 : i32, i32
  }
  func.func @transform_9(%arg0: i32) -> (i32, i32) {
    %c0_i32 = arith.constant 0 : i32
    %c0_i32_0 = arith.constant 0 : i32
    return %arg0, %c0_i32 : i32, i32
  }
}

</mosaic_0001>

<llo_original>
// kernel: generator_forward.1
$region0: #{generator_forward.1}
  #allocation0 [shape = 'u32[]', space=smem, size = 0x4, offset = 0x4, fixed_abs, tag = 'smem constant byte address 0x4 - core index']
  #allocation1 [shape = 'u32[144,128]{1,0:T(1,128)}', space=vmem, size = 0x12000, scoped, tag = 'internal scratch']
  %s0 = inlined_call_operand.vmem [shape: f32[64,128], index: 0, kind: input, shape index: {}]
  %s1 = inlined_call_operand.vmem [shape: f32[128,128], index: 1, kind: input, shape index: {}]
  %s2 = inlined_call_operand.vmem [shape: f32[1,128], index: 2, kind: input, shape index: {}]
  %s3 = inlined_call_operand.vmem [shape: f32[128,128], index: 3, kind: input, shape index: {}]
  %s4 = inlined_call_operand.vmem [shape: f32[1,128], index: 4, kind: input, shape index: {}]
  %s5 = inlined_call_operand.vmem [shape: f32[128,128], index: 5, kind: input, shape index: {}]
  %s6 = inlined_call_operand.vmem [shape: f32[1,128], index: 6, kind: input, shape index: {}]
  %s7 = inlined_call_operand.vmem [shape: f32[128,128], index: 7, kind: input, shape index: {}]
  %s8 = inlined_call_operand.vmem [shape: f32[1,128], index: 8, kind: input, shape index: {}]
  %s9 = inlined_call_operand.vmem [shape: f32[64,128], index: 9, kind: output, shape index: {}]
  %s10 = sld [smem:[#allocation0]]
  $region46: #{generator_forward.1} parent=0
    _
  %s12 = ssub.s32 1, %s10
  %s13 = scalar_select 0, %s12, %s10
  // Predicated region
  $region2: #{generator_forward.1} parent=0 // pred_check
    _
  $region3: #{generator_forward.1} parent=0 // pred_check_branch
    %15 = sbr.rel (0) target = $region5
  $region4: #{generator_forward.1} parent=0 // pred_region
    _
  $region5: #{generator_forward.1} parent=0 // pred_fallthru
    _
  // Predicated region
  $region6: #{generator_forward.1} parent=0 // pred_check
    _
  $region7: #{generator_forward.1} parent=0 // pred_check_branch
    %17 = sbr.rel (0) target = $region9
  $region8: #{generator_forward.1} parent=0 // pred_region
    _
  $region9: #{generator_forward.1} parent=0 // pred_fallthru
    _
  // Predicated region
  $region10: #{generator_forward.1} parent=0 // pred_check
    _
  $region11: #{generator_forward.1} parent=0 // pred_check_branch
    %19 = sbr.rel (0) target = $region13
  $region12: #{generator_forward.1} parent=0 // pred_region
    _
  $region13: #{generator_forward.1} parent=0 // pred_fallthru
    _
  // Predicated region
  $region14: #{generator_forward.1} parent=0 // pred_check
    _
  $region15: #{generator_forward.1} parent=0 // pred_check_branch
    %21 = sbr.rel (0) target = $region17
  $region16: #{generator_forward.1} parent=0 // pred_region
    _
  $region17: #{generator_forward.1} parent=0 // pred_fallthru
    _
  // Predicated region
  $region18: #{generator_forward.1} parent=0 // pred_check
    _
  $region19: #{generator_forward.1} parent=0 // pred_check_branch
    %23 = sbr.rel (0) target = $region21
  $region20: #{generator_forward.1} parent=0 // pred_region
    _
  $region21: #{generator_forward.1} parent=0 // pred_fallthru
    _
  // Predicated region
  $region22: #{generator_forward.1} parent=0 // pred_check
    _
  $region23: #{generator_forward.1} parent=0 // pred_check_branch
    %25 = sbr.rel (0) target = $region25
  $region24: #{generator_forward.1} parent=0 // pred_region
    _
  $region25: #{generator_forward.1} parent=0 // pred_fallthru
    _
  // Predicated region
  $region26: #{generator_forward.1} parent=0 // pred_check
    _
  $region27: #{generator_forward.1} parent=0 // pred_check_branch
    %27 = sbr.rel (0) target = $region29
  $region28: #{generator_forward.1} parent=0 // pred_region
    _
  $region29: #{generator_forward.1} parent=0 // pred_fallthru
    _
  // Predicated region
  $region30: #{generator_forward.1} parent=0 // pred_check
    _
  $region31: #{generator_forward.1} parent=0 // pred_check_branch
    %29 = sbr.rel (0) target = $region33
  $region32: #{generator_forward.1} parent=0 // pred_region
    _
  $region33: #{generator_forward.1} parent=0 // pred_fallthru
    _
  // Predicated region
  $region34: #{generator_forward.1} parent=0 // pred_check
    _
  $region35: #{generator_forward.1} parent=0 // pred_check_branch
    %31 = sbr.rel (0) target = $region37
  $region36: #{generator_forward.1} parent=0 // pred_region
    _
  $region37: #{generator_forward.1} parent=0 // pred_fallthru
    _
  %v32 = vld [vmem:[%s0] sm:$0xff]
  %v33 = vld [vmem:[%s0 + $0x8] sm:$0xff]
  %v34 = vld [vmem:[%s0 + $0x10] sm:$0xff]
  %v35 = vld [vmem:[%s0 + $0x18] sm:$0xff]
  %v36 = vld [vmem:[%s0 + $0x20] sm:$0xff]
  %v37 = vld [vmem:[%s0 + $0x28] sm:$0xff]
  %v38 = vld [vmem:[%s0 + $0x30] sm:$0xff]
  %v39 = vld [vmem:[%s0 + $0x38] sm:$0xff]
  %v40 = vld [vmem:[%s1] sm:$0xff]
  %v41 = vld [vmem:[%s1 + $0x8] sm:$0xff]
  %v42 = vld [vmem:[%s1 + $0x10] sm:$0xff]
  %v43 = vld [vmem:[%s1 + $0x18] sm:$0xff]
  %v44 = vld [vmem:[%s1 + $0x20] sm:$0xff]
  %v45 = vld [vmem:[%s1 + $0x28] sm:$0xff]
  %v46 = vld [vmem:[%s1 + $0x30] sm:$0xff]
  %v47 = vld [vmem:[%s1 + $0x38] sm:$0xff]
  %v48 = vld [vmem:[%s1 + $0x40] sm:$0xff]
  %v49 = vld [vmem:[%s1 + $0x48] sm:$0xff]
  %v50 = vld [vmem:[%s1 + $0x50] sm:$0xff]
  %v51 = vld [vmem:[%s1 + $0x58] sm:$0xff]
  %v52 = vld [vmem:[%s1 + $0x60] sm:$0xff]
  %v53 = vld [vmem:[%s1 + $0x68] sm:$0xff]
  %v54 = vld [vmem:[%s1 + $0x70] sm:$0xff]
  %v55 = vld [vmem:[%s1 + $0x78] sm:$0xff]
  %v56 = vld [vmem:[%s2] sm:$0x1]
  %v58 = vlaneseq
  %v59 = vshrl.u32 %v58, 7
  %v60 = vsub.s32 0, %v59
  %v61 = vrot.slane %v56, %v60
  %63 = vmatprep.subr.mxu0 0.0
  %64 = vmatpush1.msra.mxu0 %v55
  %65 = vmatprep.subr.mxu0 0.0
  %66 = vmatpush1.msra.mxu0 %v54
  %67 = vmatprep.subr.mxu0 0.0
  %68 = vmatpush1.msra.mxu0 %v53
  %69 = vmatprep.subr.mxu0 0.0
  %70 = vmatpush1.msra.mxu0 %v52
  %71 = vmatprep.subr.mxu0 0.0
  %72 = vmatpush1.msra.mxu0 %v51
  %73 = vmatprep.subr.mxu0 0.0
  %74 = vmatpush1.msra.mxu0 %v50
  %75 = vmatprep.subr.mxu0 0.0
  %76 = vmatpush1.msra.mxu0 %v49
  %77 = vmatprep.subr.mxu0 0.0
  %78 = vmatpush1.msra.mxu0 %v48
  %79 = vmatprep.subr.mxu0 0.0
  %80 = vmatpush1.msra.mxu0 %v47
  %81 = vmatprep.subr.mxu0 0.0
  %82 = vmatpush1.msra.mxu0 %v46
  %83 = vmatprep.subr.mxu0 0.0
  %84 = vmatpush1.msra.mxu0 %v45
  %85 = vmatprep.subr.mxu0 0.0
  %86 = vmatpush1.msra.mxu0 %v44
  %87 = vmatprep.subr.mxu0 0.0
  %88 = vmatpush1.msra.mxu0 %v43
  %89 = vmatprep.subr.mxu0 0.0
  %90 = vmatpush1.msra.mxu0 %v42
  %91 = vmatprep.subr.mxu0 0.0
  %92 = vmatpush1.msra.mxu0 %v41
  %93 = vmatprep.subr.mxu0 0.0
  %94 = vmatpush1.msra.mxu0 %v40
  %95 = vmatprep.subr.mxu0 0.0
  %96 = vmatpush2.msra.mxu0 0.0
  %97 = vmatprep.subr.mxu0 0.0
  %98 = vmatpush2.msra.mxu0 0.0
  %99 = vmatprep.subr.mxu0 0.0
  %100 = vmatpush2.msra.mxu0 0.0
  %101 = vmatprep.subr.mxu0 0.0
  %102 = vmatpush2.msra.mxu0 0.0
  %103 = vmatprep.subr.mxu0 0.0
  %104 = vmatpush2.msra.mxu0 0.0
  %105 = vmatprep.subr.mxu0 0.0
  %106 = vmatpush2.msra.mxu0 0.0
  %107 = vmatprep.subr.mxu0 0.0
  %108 = vmatpush2.msra.mxu0 0.0
  %109 = vmatprep.subr.mxu0 0.0
  %110 = vmatpush2.msra.mxu0 0.0
  %111 = vmatprep.subr.mxu0 0.0
  %112 = vmatpush2.msra.mxu0 0.0
  %113 = vmatprep.subr.mxu0 0.0
  %114 = vmatpush2.msra.mxu0 0.0
  %115 = vmatprep.subr.mxu0 0.0
  %116 = vmatpush2.msra.mxu0 0.0
  %117 = vmatprep.subr.mxu0 0.0
  %118 = vmatpush2.msra.mxu0 0.0
  %119 = vmatprep.subr.mxu0 0.0
  %120 = vmatpush2.msra.mxu0 0.0
  %121 = vmatprep.subr.mxu0 0.0
  %122 = vmatpush2.msra.mxu0 0.0
  %123 = vmatprep.subr.mxu0 0.0
  %124 = vmatpush2.msra.mxu0 0.0
  %125 = vmatprep.subr.mxu0 0.0
  %126 = vmatpush2.msra.mxu0 0.0
  %127 = vmatprep.mubr.f32.mxu0 0.0
  %128 = vmatmul.mubr.f32.gmra.mxu0 %v32
  %v129 = vpop.f32.mrf.mxu0
  %v130 = vadd.f32 %v61, %v129
  %v131 = vpop.f32.mrf.mxu0
  %132 = vmatprep.mubr.f32.mxu0 0.0
  %133 = vmatmul.mubr.f32.gmra.mxu0 %v33
  %v134 = vpop.f32.mrf.mxu0
  %v135 = vadd.f32 %v61, %v134
  %v136 = vpop.f32.mrf.mxu0
  %137 = vmatprep.mubr.f32.mxu0 0.0
  %138 = vmatmul.mubr.f32.gmra.mxu0 %v34
  %v139 = vpop.f32.mrf.mxu0
  %v140 = vadd.f32 %v61, %v139
  %v141 = vpop.f32.mrf.mxu0
  %142 = vmatprep.mubr.f32.mxu0 0.0
  %143 = vmatmul.mubr.f32.gmra.mxu0 %v35
  %v144 = vpop.f32.mrf.mxu0
  %v145 = vadd.f32 %v61, %v144
  %v146 = vpop.f32.mrf.mxu0
  %147 = vmatprep.mubr.f32.mxu0 0.0
  %148 = vmatmul.mubr.f32.gmra.mxu0 %v36
  %v149 = vpop.f32.mrf.mxu0
  %v150 = vadd.f32 %v61, %v149
  %v151 = vpop.f32.mrf.mxu0
  %152 = vmatprep.mubr.f32.mxu0 0.0
  %153 = vmatmul.mubr.f32.gmra.mxu0 %v37
  %v154 = vpop.f32.mrf.mxu0
  %v155 = vadd.f32 %v61, %v154
  %v156 = vpop.f32.mrf.mxu0
  %157 = vmatprep.mubr.f32.mxu0 0.0
  %158 = vmatmul.mubr.f32.gmra.mxu0 %v38
  %v159 = vpop.f32.mrf.mxu0
  %v160 = vadd.f32 %v61, %v159
  %v161 = vpop.f32.mrf.mxu0
  %162 = vmatprep.mubr.f32.mxu0 0.0
  %163 = vmatmul.mubr.f32.gmra.mxu0 %v39
  %v164 = vpop.f32.mrf.mxu0
  %v165 = vadd.f32 %v61, %v164
  %v166 = vpop.f32.mrf.mxu0
  %167 = vdwg.mxu0
  %v168 = vmax.f32 %v130, 0.0
  %v169 = vmax.f32 %v135, 0.0
  %v170 = vmax.f32 %v140, 0.0
  %v171 = vmax.f32 %v145, 0.0
  %v172 = vmax.f32 %v150, 0.0
  %v173 = vmax.f32 %v155, 0.0
  %v174 = vmax.f32 %v160, 0.0
  %v175 = vmax.f32 %v165, 0.0
  %v176 = vld [vmem:[%s3] sm:$0xff]
  %v177 = vld [vmem:[%s3 + $0x8] sm:$0xff]
  %v178 = vld [vmem:[%s3 + $0x10] sm:$0xff]
  %v179 = vld [vmem:[%s3 + $0x18] sm:$0xff]
  %v180 = vld [vmem:[%s3 + $0x20] sm:$0xff]
  %v181 = vld [vmem:[%s3 + $0x28] sm:$0xff]
  %v182 = vld [vmem:[%s3 + $0x30] sm:$0xff]
  %v183 = vld [vmem:[%s3 + $0x38] sm:$0xff]
  %v184 = vld [vmem:[%s3 + $0x40] sm:$0xff]
  %v185 = vld [vmem:[%s3 + $0x48] sm:$0xff]
  %v186 = vld [vmem:[%s3 + $0x50] sm:$0xff]
  %v187 = vld [vmem:[%s3 + $0x58] sm:$0xff]
  %v188 = vld [vmem:[%s3 + $0x60] sm:$0xff]
  %v189 = vld [vmem:[%s3 + $0x68] sm:$0xff]
  %v190 = vld [vmem:[%s3 + $0x70] sm:$0xff]
  %v191 = vld [vmem:[%s3 + $0x78] sm:$0xff]
  %v192 = vld [vmem:[%s4] sm:$0x1]
  %v194 = vlaneseq
  %v195 = vshrl.u32 %v194, 7
  %v196 = vsub.s32 0, %v195
  %v197 = vrot.slane %v192, %v196
  %199 = vmatprep.subr.mxu0 0.0
  %200 = vmatpush1.msra.mxu0 %v191
  %201 = vmatprep.subr.mxu0 0.0
  %202 = vmatpush1.msra.mxu0 %v190
  %203 = vmatprep.subr.mxu0 0.0
  %204 = vmatpush1.msra.mxu0 %v189
  %205 = vmatprep.subr.mxu0 0.0
  %206 = vmatpush1.msra.mxu0 %v188
  %207 = vmatprep.subr.mxu0 0.0
  %208 = vmatpush1.msra.mxu0 %v187
  %209 = vmatprep.subr.mxu0 0.0
  %210 = vmatpush1.msra.mxu0 %v186
  %211 = vmatprep.subr.mxu0 0.0
  %212 = vmatpush1.msra.mxu0 %v185
  %213 = vmatprep.subr.mxu0 0.0
  %214 = vmatpush1.msra.mxu0 %v184
  %215 = vmatprep.subr.mxu0 0.0
  %216 = vmatpush1.msra.mxu0 %v183
  %217 = vmatprep.subr.mxu0 0.0
  %218 = vmatpush1.msra.mxu0 %v182
  %219 = vmatprep.subr.mxu0 0.0
  %220 = vmatpush1.msra.mxu0 %v181
  %221 = vmatprep.subr.mxu0 0.0
  %222 = vmatpush1.msra.mxu0 %v180
  %223 = vmatprep.subr.mxu0 0.0
  %224 = vmatpush1.msra.mxu0 %v179
  %225 = vmatprep.subr.mxu0 0.0
  %226 = vmatpush1.msra.mxu0 %v178
  %227 = vmatprep.subr.mxu0 0.0
  %228 = vmatpush1.msra.mxu0 %v177
  %229 = vmatprep.subr.mxu0 0.0
  %230 = vmatpush1.msra.mxu0 %v176
  %231 = vmatprep.subr.mxu0 0.0
  %232 = vmatpush2.msra.mxu0 0.0
  %233 = vmatprep.subr.mxu0 0.0
  %234 = vmatpush2.msra.mxu0 0.0
  %235 = vmatprep.subr.mxu0 0.0
  %236 = vmatpush2.msra.mxu0 0.0
  %237 = vmatprep.subr.mxu0 0.0
  %238 = vmatpush2.msra.mxu0 0.0
  %239 = vmatprep.subr.mxu0 0.0
  %240 = vmatpush2.msra.mxu0 0.0
  %241 = vmatprep.subr.mxu0 0.0
  %242 = vmatpush2.msra.mxu0 0.0
  %243 = vmatprep.subr.mxu0 0.0
  %244 = vmatpush2.msra.mxu0 0.0
  %245 = vmatprep.subr.mxu0 0.0
  %246 = vmatpush2.msra.mxu0 0.0
  %247 = vmatprep.subr.mxu0 0.0
  %248 = vmatpush2.msra.mxu0 0.0
  %249 = vmatprep.subr.mxu0 0.0
  %250 = vmatpush2.msra.mxu0 0.0
  %251 = vmatprep.subr.mxu0 0.0
  %252 = vmatpush2.msra.mxu0 0.0
  %253 = vmatprep.subr.mxu0 0.0
  %254 = vmatpush2.msra.mxu0 0.0
  %255 = vmatprep.subr.mxu0 0.0
  %256 = vmatpush2.msra.mxu0 0.0
  %257 = vmatprep.subr.mxu0 0.0
  %258 = vmatpush2.msra.mxu0 0.0
  %259 = vmatprep.subr.mxu0 0.0
  %260 = vmatpush2.msra.mxu0 0.0
  %261 = vmatprep.subr.mxu0 0.0
  %262 = vmatpush2.msra.mxu0 0.0
  %263 = vmatprep.mubr.f32.mxu0 0.0
  %264 = vmatmul.mubr.f32.gmra.mxu0 %v168
  %v265 = vpop.f32.mrf.mxu0
  %v266 = vadd.f32 %v197, %v265
  %v267 = vpop.f32.mrf.mxu0
  %268 = vmatprep.mubr.f32.mxu0 0.0
  %269 = vmatmul.mubr.f32.gmra.mxu0 %v169
  %v270 = vpop.f32.mrf.mxu0
  %v271 = vadd.f32 %v197, %v270
  %v272 = vpop.f32.mrf.mxu0
  %273 = vmatprep.mubr.f32.mxu0 0.0
  %274 = vmatmul.mubr.f32.gmra.mxu0 %v170
  %v275 = vpop.f32.mrf.mxu0
  %v276 = vadd.f32 %v197, %v275
  %v277 = vpop.f32.mrf.mxu0
  %278 = vmatprep.mubr.f32.mxu0 0.0
  %279 = vmatmul.mubr.f32.gmra.mxu0 %v171
  %v280 = vpop.f32.mrf.mxu0
  %v281 = vadd.f32 %v197, %v280
  %v282 = vpop.f32.mrf.mxu0
  %283 = vmatprep.mubr.f32.mxu0 0.0
  %284 = vmatmul.mubr.f32.gmra.mxu0 %v172
  %v285 = vpop.f32.mrf.mxu0
  %v286 = vadd.f32 %v197, %v285
  %v287 = vpop.f32.mrf.mxu0
  %288 = vmatprep.mubr.f32.mxu0 0.0
  %289 = vmatmul.mubr.f32.gmra.mxu0 %v173
  %v290 = vpop.f32.mrf.mxu0
  %v291 = vadd.f32 %v197, %v290
  %v292 = vpop.f32.mrf.mxu0
  %293 = vmatprep.mubr.f32.mxu0 0.0
  %294 = vmatmul.mubr.f32.gmra.mxu0 %v174
  %v295 = vpop.f32.mrf.mxu0
  %v296 = vadd.f32 %v197, %v295
  %v297 = vpop.f32.mrf.mxu0
  %298 = vmatprep.mubr.f32.mxu0 0.0
  %299 = vmatmul.mubr.f32.gmra.mxu0 %v175
  %v300 = vpop.f32.mrf.mxu0
  %v301 = vadd.f32 %v197, %v300
  %v302 = vpop.f32.mrf.mxu0
  %303 = vdwg.mxu0
  %v304 = vmax.f32 %v266, 0.0
  %v305 = vmax.f32 %v271, 0.0
  %v306 = vmax.f32 %v276, 0.0
  %v307 = vmax.f32 %v281, 0.0
  %v308 = vmax.f32 %v286, 0.0
  %v309 = vmax.f32 %v291, 0.0
  %v310 = vmax.f32 %v296, 0.0
  %v311 = vmax.f32 %v301, 0.0
  %v312 = vld [vmem:[%s5] sm:$0xff]
  %v313 = vld [vmem:[%s5 + $0x8] sm:$0xff]
  %v314 = vld [vmem:[%s5 + $0x10] sm:$0xff]
  %v315 = vld [vmem:[%s5 + $0x18] sm:$0xff]
  %v316 = vld [vmem:[%s5 + $0x20] sm:$0xff]
  %v317 = vld [vmem:[%s5 + $0x28] sm:$0xff]
  %v318 = vld [vmem:[%s5 + $0x30] sm:$0xff]
  %v319 = vld [vmem:[%s5 + $0x38] sm:$0xff]
  %v320 = vld [vmem:[%s5 + $0x40] sm:$0xff]
  %v321 = vld [vmem:[%s5 + $0x48] sm:$0xff]
  %v322 = vld [vmem:[%s5 + $0x50] sm:$0xff]
  %v323 = vld [vmem:[%s5 + $0x58] sm:$0xff]
  %v324 = vld [vmem:[%s5 + $0x60] sm:$0xff]
  %v325 = vld [vmem:[%s5 + $0x68] sm:$0xff]
  %v326 = vld [vmem:[%s5 + $0x70] sm:$0xff]
  %v327 = vld [vmem:[%s5 + $0x78] sm:$0xff]
  %v328 = vld [vmem:[%s6] sm:$0x1]
  %v330 = vlaneseq
  %v331 = vshrl.u32 %v330, 7
  %v332 = vsub.s32 0, %v331
  %v333 = vrot.slane %v328, %v332
  %335 = vmatprep.subr.mxu0 0.0
  %336 = vmatpush1.msra.mxu0 %v327
  %337 = vmatprep.subr.mxu0 0.0
  %338 = vmatpush1.msra.mxu0 %v326
  %339 = vmatprep.subr.mxu0 0.0
  %340 = vmatpush1.msra.mxu0 %v325
  %341 = vmatprep.subr.mxu0 0.0
  %342 = vmatpush1.msra.mxu0 %v324
  %343 = vmatprep.subr.mxu0 0.0
  %344 = vmatpush1.msra.mxu0 %v323
  %345 = vmatprep.subr.mxu0 0.0
  %346 = vmatpush1.msra.mxu0 %v322
  %347 = vmatprep.subr.mxu0 0.0
  %348 = vmatpush1.msra.mxu0 %v321
  %349 = vmatprep.subr.mxu0 0.0
  %350 = vmatpush1.msra.mxu0 %v320
  %351 = vmatprep.subr.mxu0 0.0
  %352 = vmatpush1.msra.mxu0 %v319
  %353 = vmatprep.subr.mxu0 0.0
  %354 = vmatpush1.msra.mxu0 %v318
  %355 = vmatprep.subr.mxu0 0.0
  %356 = vmatpush1.msra.mxu0 %v317
  %357 = vmatprep.subr.mxu0 0.0
  %358 = vmatpush1.msra.mxu0 %v316
  %359 = vmatprep.subr.mxu0 0.0
  %360 = vmatpush1.msra.mxu0 %v315
  %361 = vmatprep.subr.mxu0 0.0
  %362 = vmatpush1.msra.mxu0 %v314
  %363 = vmatprep.subr.mxu0 0.0
  %364 = vmatpush1.msra.mxu0 %v313
  %365 = vmatprep.subr.mxu0 0.0
  %366 = vmatpush1.msra.mxu0 %v312
  %367 = vmatprep.subr.mxu0 0.0
  %368 = vmatpush2.msra.mxu0 0.0
  %369 = vmatprep.subr.mxu0 0.0
  %370 = vmatpush2.msra.mxu0 0.0
  %371 = vmatprep.subr.mxu0 0.0
  %372 = vmatpush2.msra.mxu0 0.0
  %373 = vmatprep.subr.mxu0 0.0
  %374 = vmatpush2.msra.mxu0 0.0
  %375 = vmatprep.subr.mxu0 0.0
  %376 = vmatpush2.msra.mxu0 0.0
  %377 = vmatprep.subr.mxu0 0.0
  %378 = vmatpush2.msra.mxu0 0.0
  %379 = vmatprep.subr.mxu0 0.0
  %380 = vmatpush2.msra.mxu0 0.0
  %381 = vmatprep.subr.mxu0 0.0
  %382 = vmatpush2.msra.mxu0 0.0
  %383 = vmatprep.subr.mxu0 0.0
  %384 = vmatpush2.msra.mxu0 0.0
  %385 = vmatprep.subr.mxu0 0.0
  %386 = vmatpush2.msra.mxu0 0.0
  %387 = vmatprep.subr.mxu0 0.0
  %388 = vmatpush2.msra.mxu0 0.0
  %389 = vmatprep.subr.mxu0 0.0
  %390 = vmatpush2.msra.mxu0 0.0
  %391 = vmatprep.subr.mxu0 0.0
  %392 = vmatpush2.msra.mxu0 0.0
  %393 = vmatprep.subr.mxu0 0.0
  %394 = vmatpush2.msra.mxu0 0.0
  %395 = vmatprep.subr.mxu0 0.0
  %396 = vmatpush2.msra.mxu0 0.0
  %397 = vmatprep.subr.mxu0 0.0
  %398 = vmatpush2.msra.mxu0 0.0
  %399 = vmatprep.mubr.f32.mxu0 0.0
  %400 = vmatmul.mubr.f32.gmra.mxu0 %v304
  %v401 = vpop.f32.mrf.mxu0
  %v402 = vadd.f32 %v333, %v401
  %v403 = vpop.f32.mrf.mxu0
  %404 = vmatprep.mubr.f32.mxu0 0.0
  %405 = vmatmul.mubr.f32.gmra.mxu0 %v305
  %v406 = vpop.f32.mrf.mxu0
  %v407 = vadd.f32 %v333, %v406
  %v408 = vpop.f32.mrf.mxu0
  %409 = vmatprep.mubr.f32.mxu0 0.0
  %410 = vmatmul.mubr.f32.gmra.mxu0 %v306
  %v411 = vpop.f32.mrf.mxu0
  %v412 = vadd.f32 %v333, %v411
  %v413 = vpop.f32.mrf.mxu0
  %414 = vmatprep.mubr.f32.mxu0 0.0
  %415 = vmatmul.mubr.f32.gmra.mxu0 %v307
  %v416 = vpop.f32.mrf.mxu0
  %v417 = vadd.f32 %v333, %v416
  %v418 = vpop.f32.mrf.mxu0
  %419 = vmatprep.mubr.f32.mxu0 0.0
  %420 = vmatmul.mubr.f32.gmra.mxu0 %v308
  %v421 = vpop.f32.mrf.mxu0
  %v422 = vadd.f32 %v333, %v421
  %v423 = vpop.f32.mrf.mxu0
  %424 = vmatprep.mubr.f32.mxu0 0.0
  %425 = vmatmul.mubr.f32.gmra.mxu0 %v309
  %v426 = vpop.f32.mrf.mxu0
  %v427 = vadd.f32 %v333, %v426
  %v428 = vpop.f32.mrf.mxu0
  %429 = vmatprep.mubr.f32.mxu0 0.0
  %430 = vmatmul.mubr.f32.gmra.mxu0 %v310
  %v431 = vpop.f32.mrf.mxu0
  %v432 = vadd.f32 %v333, %v431
  %v433 = vpop.f32.mrf.mxu0
  %434 = vmatprep.mubr.f32.mxu0 0.0
  %435 = vmatmul.mubr.f32.gmra.mxu0 %v311
  %v436 = vpop.f32.mrf.mxu0
  %v437 = vadd.f32 %v333, %v436
  %v438 = vpop.f32.mrf.mxu0
  %439 = vdwg.mxu0
  %v440 = vmax.f32 %v402, 0.0
  %v441 = vmax.f32 %v407, 0.0
  %v442 = vmax.f32 %v412, 0.0
  %v443 = vmax.f32 %v417, 0.0
  %v444 = vmax.f32 %v422, 0.0
  %v445 = vmax.f32 %v427, 0.0
  %v446 = vmax.f32 %v432, 0.0
  %v447 = vmax.f32 %v437, 0.0
  %v448 = vld [vmem:[%s7] sm:$0xff]
  %v449 = vld [vmem:[%s7 + $0x8] sm:$0xff]
  %v450 = vld [vmem:[%s7 + $0x10] sm:$0xff]
  %v451 = vld [vmem:[%s7 + $0x18] sm:$0xff]
  %v452 = vld [vmem:[%s7 + $0x20] sm:$0xff]
  %v453 = vld [vmem:[%s7 + $0x28] sm:$0xff]
  %v454 = vld [vmem:[%s7 + $0x30] sm:$0xff]
  %v455 = vld [vmem:[%s7 + $0x38] sm:$0xff]
  %v456 = vld [vmem:[%s7 + $0x40] sm:$0xff]
  %v457 = vld [vmem:[%s7 + $0x48] sm:$0xff]
  %v458 = vld [vmem:[%s7 + $0x50] sm:$0xff]
  %v459 = vld [vmem:[%s7 + $0x58] sm:$0xff]
  %v460 = vld [vmem:[%s7 + $0x60] sm:$0xff]
  %v461 = vld [vmem:[%s7 + $0x68] sm:$0xff]
  %v462 = vld [vmem:[%s7 + $0x70] sm:$0xff]
  %v463 = vld [vmem:[%s7 + $0x78] sm:$0xff]
  %v464 = vld [vmem:[%s8] sm:$0x1]
  %v466 = vlaneseq
  %v467 = vshrl.u32 %v466, 7
  %v468 = vsub.s32 0, %v467
  %v469 = vrot.slane %v464, %v468
  %471 = vmatprep.subr.mxu0 0.0
  %472 = vmatpush1.msra.mxu0 %v463
  %473 = vmatprep.subr.mxu0 0.0
  %474 = vmatpush1.msra.mxu0 %v462
  %475 = vmatprep.subr.mxu0 0.0
  %476 = vmatpush1.msra.mxu0 %v461
  %477 = vmatprep.subr.mxu0 0.0
  %478 = vmatpush1.msra.mxu0 %v460
  %479 = vmatprep.subr.mxu0 0.0
  %480 = vmatpush1.msra.mxu0 %v459
  %481 = vmatprep.subr.mxu0 0.0
  %482 = vmatpush1.msra.mxu0 %v458
  %483 = vmatprep.subr.mxu0 0.0
  %484 = vmatpush1.msra.mxu0 %v457
  %485 = vmatprep.subr.mxu0 0.0
  %486 = vmatpush1.msra.mxu0 %v456
  %487 = vmatprep.subr.mxu0 0.0
  %488 = vmatpush1.msra.mxu0 %v455
  %489 = vmatprep.subr.mxu0 0.0
  %490 = vmatpush1.msra.mxu0 %v454
  %491 = vmatprep.subr.mxu0 0.0
  %492 = vmatpush1.msra.mxu0 %v453
  %493 = vmatprep.subr.mxu0 0.0
  %494 = vmatpush1.msra.mxu0 %v452
  %495 = vmatprep.subr.mxu0 0.0
  %496 = vmatpush1.msra.mxu0 %v451
  %497 = vmatprep.subr.mxu0 0.0
  %498 = vmatpush1.msra.mxu0 %v450
  %499 = vmatprep.subr.mxu0 0.0
  %500 = vmatpush1.msra.mxu0 %v449
  %501 = vmatprep.subr.mxu0 0.0
  %502 = vmatpush1.msra.mxu0 %v448
  %503 = vmatprep.subr.mxu0 0.0
  %504 = vmatpush2.msra.mxu0 0.0
  %505 = vmatprep.subr.mxu0 0.0
  %506 = vmatpush2.msra.mxu0 0.0
  %507 = vmatprep.subr.mxu0 0.0
  %508 = vmatpush2.msra.mxu0 0.0
  %509 = vmatprep.subr.mxu0 0.0
  %510 = vmatpush2.msra.mxu0 0.0
  %511 = vmatprep.subr.mxu0 0.0
  %512 = vmatpush2.msra.mxu0 0.0
  %513 = vmatprep.subr.mxu0 0.0
  %514 = vmatpush2.msra.mxu0 0.0
  %515 = vmatprep.subr.mxu0 0.0
  %516 = vmatpush2.msra.mxu0 0.0
  %517 = vmatprep.subr.mxu0 0.0
  %518 = vmatpush2.msra.mxu0 0.0
  %519 = vmatprep.subr.mxu0 0.0
  %520 = vmatpush2.msra.mxu0 0.0
  %521 = vmatprep.subr.mxu0 0.0
  %522 = vmatpush2.msra.mxu0 0.0
  %523 = vmatprep.subr.mxu0 0.0
  %524 = vmatpush2.msra.mxu0 0.0
  %525 = vmatprep.subr.mxu0 0.0
  %526 = vmatpush2.msra.mxu0 0.0
  %527 = vmatprep.subr.mxu0 0.0
  %528 = vmatpush2.msra.mxu0 0.0
  %529 = vmatprep.subr.mxu0 0.0
  %530 = vmatpush2.msra.mxu0 0.0
  %531 = vmatprep.subr.mxu0 0.0
  %532 = vmatpush2.msra.mxu0 0.0
  %533 = vmatprep.subr.mxu0 0.0
  %534 = vmatpush2.msra.mxu0 0.0
  %535 = vmatprep.mubr.f32.mxu0 0.0
  %536 = vmatmul.mubr.f32.gmra.mxu0 %v440
  %v537 = vpop.f32.mrf.mxu0
  %v538 = vadd.f32 %v469, %v537
  %v539 = vpop.f32.mrf.mxu0
  %540 = vmatprep.mubr.f32.mxu0 0.0
  %541 = vmatmul.mubr.f32.gmra.mxu0 %v441
  %v542 = vpop.f32.mrf.mxu0
  %v543 = vadd.f32 %v469, %v542
  %v544 = vpop.f32.mrf.mxu0
  %545 = vmatprep.mubr.f32.mxu0 0.0
  %546 = vmatmul.mubr.f32.gmra.mxu0 %v442
  %v547 = vpop.f32.mrf.mxu0
  %v548 = vadd.f32 %v469, %v547
  %v549 = vpop.f32.mrf.mxu0
  %550 = vmatprep.mubr.f32.mxu0 0.0
  %551 = vmatmul.mubr.f32.gmra.mxu0 %v443
  %v552 = vpop.f32.mrf.mxu0
  %v553 = vadd.f32 %v469, %v552
  %v554 = vpop.f32.mrf.mxu0
  %555 = vmatprep.mubr.f32.mxu0 0.0
  %556 = vmatmul.mubr.f32.gmra.mxu0 %v444
  %v557 = vpop.f32.mrf.mxu0
  %v558 = vadd.f32 %v469, %v557
  %v559 = vpop.f32.mrf.mxu0
  %560 = vmatprep.mubr.f32.mxu0 0.0
  %561 = vmatmul.mubr.f32.gmra.mxu0 %v445
  %v562 = vpop.f32.mrf.mxu0
  %v563 = vadd.f32 %v469, %v562
  %v564 = vpop.f32.mrf.mxu0
  %565 = vmatprep.mubr.f32.mxu0 0.0
  %566 = vmatmul.mubr.f32.gmra.mxu0 %v446
  %v567 = vpop.f32.mrf.mxu0
  %v568 = vadd.f32 %v469, %v567
  %v569 = vpop.f32.mrf.mxu0
  %570 = vmatprep.mubr.f32.mxu0 0.0
  %571 = vmatmul.mubr.f32.gmra.mxu0 %v447
  %v572 = vpop.f32.mrf.mxu0
  %v573 = vadd.f32 %v469, %v572
  %v574 = vpop.f32.mrf.mxu0
  %575 = vdwg.mxu0
  %576 = vst [vmem:[%s9] sm:$0xff] %v538
  %577 = vst [vmem:[%s9 + $0x8] sm:$0xff] %v543
  %578 = vst [vmem:[%s9 + $0x10] sm:$0xff] %v548
  %579 = vst [vmem:[%s9 + $0x18] sm:$0xff] %v553
  %580 = vst [vmem:[%s9 + $0x20] sm:$0xff] %v558
  %581 = vst [vmem:[%s9 + $0x28] sm:$0xff] %v563
  %582 = vst [vmem:[%s9 + $0x30] sm:$0xff] %v568
  %583 = vst [vmem:[%s9 + $0x38] sm:$0xff] %v573
  // Predicated region
  $region38: #{generator_forward.1} parent=0 // pred_check
    _
  $region39: #{generator_forward.1} parent=0 // pred_check_branch
    %585 = sbr.rel (0) target = $region41
  $region40: #{generator_forward.1} parent=0 // pred_region
    _
  $region41: #{generator_forward.1} parent=0 // pred_fallthru
    _
  // Predicated region
  $region42: #{generator_forward.1} parent=0 // pred_check
    _
  $region43: #{generator_forward.1} parent=0 // pred_check_branch
    %587 = sbr.rel (0) target = $region45
  $region44: #{generator_forward.1} parent=0 // pred_region
    _
  $region45: #{generator_forward.1} parent=0 // pred_fallthru
    _

</llo_original>
